<compile_context>
chip_gen: v7x
topology: tpu7x:2x2x1
jax: 0.10.0
libtpu: 0.0.40
codegen_flags: <defaults>
</compile_context>

<pallas_src>
import functools

import jax
import jax.numpy as jnp
from jax.experimental import pallas as pl
from jax.experimental.pallas import tpu as pltpu


def _round_up(n, m):
    return ((n + m - 1) // m) * m


def _update_graph_kernel(x_ref, d1_ref, o_ref):
    """Rank-1 forward: out = rowsum(x) * d1_row.

    x_ref:  (tb, in_ch)   input tile, last dim == full array extent (no lane pad)
    d1_ref: (1, out_ch)   precomputed L1-normalized graph row (grid-resident)
    o_ref:  (tb, out_ch)  output tile, last dim == full array extent
    """
    row_sum = jnp.sum(x_ref[...], axis=1, keepdims=True)      # (tb, 1) lane reduce (XLU)
    o_ref[...] = (row_sum * d1_ref[...]).astype(o_ref.dtype)  # (tb, out_ch), VPU


@functools.partial(jax.jit, static_argnames=("block_batch",))
def update_graph_forward(x, W, prob_all_au=None, block_batch=4096):
    """UpdateGraph.forward(x). Graph-weight (d1) construction happens in the wrapper."""
    x = jnp.asarray(x, jnp.float32)
    W = jnp.asarray(W, jnp.float32)
    batch, in_ch = x.shape
    num_au, out_ch = W.shape
    if prob_all_au is None:
        prob = jnp.ones((num_au, 1), jnp.float32)
    else:
        prob = jnp.asarray(prob_all_au, jnp.float32).reshape(num_au, 1)

    # --- graph-weight construction: tiny (num_au, out_ch) op, negligible in XLA ---
    # Every row of the PyTorch `d` is the same per-column product, so d1 is rank-1;
    # the kernel only needs its single normalized row.
    col = jnp.prod(W * prob, axis=0)                              # (out_ch,)
    l1 = jnp.sum(jnp.abs(col))
    d1_row = (col / jnp.maximum(l1, 1e-12)).reshape(1, out_ch)    # F.normalize(p=1, dim=1)
    # TODO(synk): switch the AU product to log-space accumulation if num_au grows
    # (plain f32 product can underflow to 0 for many/tiny factors, same as PyTorch).

    # --- batch tiling (no channel padding: last block dims use full extents) ---
    batch_pad = _round_up(batch, 8)            # sublane alignment only (<= 7 extra rows)

    # Keep double-buffered (x + out) tiles well under the scoped-VMEM default
    # (16 MiB on v5e, 32 MiB on v6e/v7x). VMEM lays lanes out padded to 128, so
    # budget with the padded lane widths even though HBM traffic is unpadded.
    in_lanes = _round_up(in_ch, 128)
    out_lanes = _round_up(out_ch, 128)
    row_bytes = 4 * (in_lanes + out_lanes)
    vmem_budget = 12 * 1024 * 1024
    tb_cap = max(8, (vmem_budget // (2 * row_bytes)) // 8 * 8)
    tb = min(_round_up(max(block_batch, 8), 8), batch_pad, tb_cap)
    # Prefer >= 2 grid steps when the batch allows it, so the "parallel" axis can
    # shard across v7x's 2 TensorCores (harmless one extra ~0.35us step elsewhere).
    if batch_pad >= 16:
        tb = min(tb, _round_up(pl.cdiv(batch_pad, 2), 8))
    grid = (pl.cdiv(batch_pad, tb),)

    x_in = x if batch_pad == batch else jnp.pad(x, ((0, batch_pad - batch), (0, 0)))

    out = pl.pallas_call(
        _update_graph_kernel,
        out_shape=jax.ShapeDtypeStruct((batch_pad, out_ch), jnp.float32),
        grid_spec=pltpu.PrefetchScalarGridSpec(
            num_scalar_prefetch=0,
            grid=grid,
            in_specs=[
                pl.BlockSpec((tb, in_ch), lambda i: (i, 0)),   # x tile (unpadded lanes)
                pl.BlockSpec((1, out_ch), lambda i: (0, 0)),   # d1 row (resident)
            ],
            out_specs=pl.BlockSpec((tb, out_ch), lambda i: (i, 0)),
        ),
        compiler_params=pltpu.CompilerParams(
            dimension_semantics=("parallel",),
            vmem_limit_bytes=32 * 1024 * 1024,
        ),
        cost_estimate=pl.CostEstimate(
            flops=2 * batch_pad * (in_ch + out_ch),
            transcendentals=0,
            bytes_accessed=4 * (batch_pad * (in_ch + out_ch) + out_ch),
        ),
    )(x_in, d1_row)
    return out if batch_pad == batch else out[:batch]


def reference_forward(x, W, prob_all_au):
    """Plain-JAX replica of the PyTorch module (d -> d1 -> x @ d1)."""
    x = jnp.asarray(x, jnp.float32)
    W = jnp.asarray(W, jnp.float32)
    prob = jnp.asarray(prob_all_au, jnp.float32).reshape(-1, 1)
    in_ch, out_ch = x.shape[1], W.shape[1]
    col = jnp.prod(W * prob, axis=0)                         # (out_ch,)
    d = jnp.broadcast_to(col[None, :], (in_ch, out_ch))
    l1 = jnp.sum(jnp.abs(d), axis=1, keepdims=True)
    d1 = d / jnp.maximum(l1, 1e-12)                          # F.normalize(p=1, dim=1)
    return x @ d1


if __name__ == "__main__":
    batch, in_channels, out_channels, num_au = 2, 4, 6, 8

    key = jax.random.PRNGKey(0)
    k_w, k_p, k_x, k_x2 = jax.random.split(key, 4)

    # W: AU->emotion conditional-probability-like matrix, positive entries.
    W = jax.random.uniform(
        k_w, (num_au, out_channels), minval=0.1, maxval=1.0, dtype=jnp.float32
    )
    # prob_all_au: per-AU probabilities, shape (num_au, 1).
    prob_all_au = jax.random.uniform(
        k_p, (num_au, 1), minval=0.1, maxval=1.0, dtype=jnp.float32
    )
    # Input x: (batch, in_channels).
    x = jax.random.normal(k_x, (batch, in_channels), dtype=jnp.float32)

    out = jax.block_until_ready(update_graph_forward(x, W, prob_all_au))
    ref = reference_forward(x, W, prob_all_au)
    assert out.shape == (batch, out_channels)
    assert jnp.allclose(out, ref, atol=1e-5, rtol=1e-5), "mismatch vs reference (small)"

    # Larger batch: exercises the multi-tile "parallel" grid, batch padding to 8,
    # and partial edge blocks.
    big_batch = 521
    x_big = jax.random.normal(k_x2, (big_batch, in_channels), dtype=jnp.float32)
    out_big = jax.block_until_ready(update_graph_forward(x_big, W, prob_all_au))
    ref_big = reference_forward(x_big, W, prob_all_au)
    assert out_big.shape == (big_batch, out_channels)
    assert jnp.allclose(out_big, ref_big, atol=1e-5, rtol=1e-5), "mismatch vs reference (big)"

    # Default prob_all_au=None path (module default: all ones).
    out_def = jax.block_until_ready(update_graph_forward(x, W))
    ref_def = reference_forward(x, W, jnp.ones((num_au, 1), jnp.float32))
    assert jnp.allclose(out_def, ref_def, atol=1e-5, rtol=1e-5), "mismatch vs reference (default prob)"

    print("KERNEL_OK")
</pallas_src>

<mosaic_0001>
module attributes {stable_mosaic.version = 11 : i64} {
  func.func @_update_graph_kernel(%arg0: i32, %arg1: memref<8x4xf32, #tpu.memory_space<vmem>>, %arg2: memref<1x6xf32, #tpu.memory_space<vmem>>, %arg3: memref<8x6xf32, #tpu.memory_space<vmem>>) attributes {dimension_semantics = [#tpu.dimension_semantics<parallel>], iteration_bounds = array<i64: 1>, scalar_prefetch = 0 : i64, scratch_operands = 0 : i64, tpu.core_type = #tpu.core_type<tc>, window_params = [{transform_indices = @transform_0, window_bounds = array<i64: 8, 4>}, {pipeline_mode = #tpu.pipeline_mode<synchronous>, transform_indices = @transform_1, window_bounds = array<i64: 1, 6>}, {transform_indices = @transform_2, window_bounds = array<i64: 8, 6>}]} {
    %c0 = arith.constant 0 : index
    %c0_0 = arith.constant 0 : index
    %0 = vector.load %arg1[%c0, %c0_0] : memref<8x4xf32, #tpu.memory_space<vmem>>, vector<8x4xf32>
    %cst = arith.constant dense<0.000000e+00> : vector<8xf32>
    %1 = vector.multi_reduction <add>, %0, %cst [1] : vector<8x4xf32> to vector<8xf32>
    %2 = vector.shape_cast %1 : vector<8xf32> to vector<8x1xf32>
    %c0_1 = arith.constant 0 : index
    %c0_2 = arith.constant 0 : index
    %3 = vector.load %arg2[%c0_1, %c0_2] : memref<1x6xf32, #tpu.memory_space<vmem>>, vector<1x6xf32>
    %4 = vector.broadcast %2 : vector<8x1xf32> to vector<8x6xf32>
    %5 = vector.broadcast %3 : vector<1x6xf32> to vector<8x6xf32>
    %6 = arith.mulf %4, %5 : vector<8x6xf32>
    %c0_3 = arith.constant 0 : index
    %c0_4 = arith.constant 0 : index
    %7 = vector.load %arg3[%c0_3, %c0_4] : memref<8x6xf32, #tpu.memory_space<vmem>>, vector<8x6xf32>
    tpu.vector_store %arg3[%c0_3, %c0_4], %6 {strides = array<i32>} : memref<8x6xf32, #tpu.memory_space<vmem>>, vector<8x6xf32>,
    return
  }
  func.func @transform_0(%arg0: i32) -> (i32, i32) {
    %c0_i32 = arith.constant 0 : i32
    %c0_i32_0 = arith.constant 0 : i32
    return %arg0, %c0_i32 : i32, i32
  }
  func.func @transform_1(%arg0: i32) -> (i32, i32) {
    %c0_i32 = arith.constant 0 : i32
    %c0_i32_0 = arith.constant 0 : i32
    %c0_i32_1 = arith.constant 0 : i32
    return %c0_i32, %c0_i32_0 : i32, i32
  }
  func.func @transform_2(%arg0: i32) -> (i32, i32) {
    %c0_i32 = arith.constant 0 : i32
    %c0_i32_0 = arith.constant 0 : i32
    return %arg0, %c0_i32 : i32, i32
  }
}

</mosaic_0001>

<llo_original>
// kernel: update_graph_forward.1
$region0: #{update_graph_forward.1}
  #allocation0 [shape = 'u32[]', space=smem, size = 0x4, offset = 0x4, fixed_abs, tag = 'smem constant byte address 0x4 - core index']
  #allocation1 [shape = 'u32[144,128]{1,0:T(1,128)}', space=vmem, size = 0x12000, scoped, tag = 'internal scratch']
  %s0 = inlined_call_operand.vmem [shape: f32[8,4], index: 0, kind: input, shape index: {}]
  %s1 = inlined_call_operand.vmem [shape: f32[1,6], index: 1, kind: input, shape index: {}]
  %s2 = inlined_call_operand.vmem [shape: f32[8,6], index: 2, kind: output, shape index: {}]
  %s3 = sld [smem:[#allocation0]]
  $region18: #{update_graph_forward.1} parent=0
    _
  %s5 = ssub.s32 1, %s3
  %s6 = scalar_select 0, %s5, %s3
  // Predicated region
  $region2: #{update_graph_forward.1} parent=0 // pred_check
    _
  $region3: #{update_graph_forward.1} parent=0 // pred_check_branch
    %8 = sbr.rel (0) target = $region5
  $region4: #{update_graph_forward.1} parent=0 // pred_region
    _
  $region5: #{update_graph_forward.1} parent=0 // pred_fallthru
    _
  // Predicated region
  $region6: #{update_graph_forward.1} parent=0 // pred_check
    _
  $region7: #{update_graph_forward.1} parent=0 // pred_check_branch
    %10 = sbr.rel (0) target = $region9
  $region8: #{update_graph_forward.1} parent=0 // pred_region
    _
  $region9: #{update_graph_forward.1} parent=0 // pred_fallthru
    _
  %v11 = vld [vmem:[%s0] sm:$0xff]
  %vm12 = vcmask 31744
  %v13 = vsel %vm12, %v11, 0.0
  %14 = vadd.xlane.f32.xlu0 %v13
  %v15 = vpop.xlane.xlu0 %14
  %v16 = vld [vmem:[%s1] sm:$0x1]
  %v18 = vlaneseq
  %v19 = vshrl.u32 %v18, 7
  %v20 = vsub.s32 0, %v19
  %v21 = vrot.slane %v16, %v20
  %v23 = vmul.f32 %v15, %v21
  %vm24 = vcmask 48128
  %25 = vst.msk [vmem:[%s2] sm:$0xff] %vm24, %v23
  // Predicated region
  $region10: #{update_graph_forward.1} parent=0 // pred_check
    _
  $region11: #{update_graph_forward.1} parent=0 // pred_check_branch
    %27 = sbr.rel (0) target = $region13
  $region12: #{update_graph_forward.1} parent=0 // pred_region
    _
  $region13: #{update_graph_forward.1} parent=0 // pred_fallthru
    _
  // Predicated region
  $region14: #{update_graph_forward.1} parent=0 // pred_check
    _
  $region15: #{update_graph_forward.1} parent=0 // pred_check_branch
    %29 = sbr.rel (0) target = $region17
  $region16: #{update_graph_forward.1} parent=0 // pred_region
    _
  $region17: #{update_graph_forward.1} parent=0 // pred_fallthru
    _

</llo_original>
